<compile_context>
chip_gen: v7x
topology: tpu7x:2x2x1
jax: 0.10.0
libtpu: 0.0.40
codegen_flags: <defaults>
</compile_context>

<pallas_src>
import functools

import numpy as np
import jax
import jax.numpy as jnp
from jax.experimental import pallas as pl
from jax.experimental.pallas import tpu as pltpu

EPS = float(np.finfo(np.float32).eps)  # torch.finfo(torch.float32).eps


def _round_up(x, m):
    return ((x + m - 1) // m) * m


def _cdiv(a, b):
    return -(-a // b)


# ----------------------- deterministic parameter construction ---------------
def trimf(x, params):
    a, b, c = params
    y = np.zeros_like(x, dtype=np.float64)
    if a < b:
        idx = np.logical_and(a < x, x < b)
        y[idx] = (x[idx] - a) / (b - a)
    if b < c:
        idx = np.logical_and(b < x, x < c)
        y[idx] = (c - x[idx]) / (c - b)
    y[x == b] = 1.0
    return y


def make_lfcc_filter_bank(fn, sr, filter_num):
    K = fn // 2 + 1
    f = sr / 2.0 * np.linspace(0.0, 1.0, K)
    bands = np.linspace(f.min(), f.max(), filter_num + 2)
    fb = np.zeros((K, filter_num), dtype=np.float64)
    for i in range(filter_num):
        fb[:, i] = trimf(f, [bands[i], bands[i + 1], bands[i + 2]])
    return fb.astype(np.float32)


def make_dct_T(N):
    # Orthonormal DCT-II matrix D (torch_dct dct(I,'ortho')); LinearDCT computes
    # y = x @ D.T, so we store D.T directly.
    n = np.arange(N)
    k = np.arange(N)[:, None]
    D = np.sqrt(2.0 / N) * np.cos(np.pi * (2 * n[None, :] + 1) * k / (2.0 * N))
    D[0, :] = 1.0 / np.sqrt(N)
    return np.ascontiguousarray(D.T).astype(np.float32)  # (N, N)


def make_dft_mats(fn):
    K = fn // 2 + 1
    n = np.arange(fn)[:, None]
    k = np.arange(K)[None, :]
    ang = 2.0 * np.pi * n * k / fn
    return np.cos(ang), np.sin(ang)        # float64


def make_window(fl, fn):
    # periodic Hamming (torch.hamming_window default), zero-padded centered to
    # fn (torch.stft pads win_length < n_fft windows this way).
    w = 0.54 - 0.46 * np.cos(2.0 * np.pi * np.arange(fl) / fl)
    full = np.zeros(fn, dtype=np.float64)
    left = (fn - fl) // 2
    full[left:left + fl] = w
    return full                             # float64


@functools.lru_cache(maxsize=None)
def _lfcc_constants_np(fl, fn, sr, filter_num):
    """Constant operands, built once per config (cached) and constant-folded
    under jit so they are never rebuilt / re-uploaded per call."""
    K = fn // 2 + 1
    F = filter_num
    W = _round_up(2 * K, 128)    # packed [cos|sin] width, lane-dense
    Fp = _round_up(F, 128)       # lane-dense cepstral width

    # Fused window + real DFT: cols [0:K] = win*cos, [K:2K] = win*sin, rest 0.
    # (frames*win) @ [cos|sin] == frames @ (diag(win)[cos|sin]).
    win = make_window(fl, fn)
    cos_m, sin_m = make_dft_mats(fn)
    c2 = np.zeros((fn, W), dtype=np.float32)
    c2[:, :K] = (win[:, None] * cos_m).astype(np.float32)
    c2[:, K:2 * K] = (win[:, None] * sin_m).astype(np.float32)

    # Filter bank with rows duplicated for the re^2 and im^2 halves:
    #   (re^2 + im^2) @ fb == [re^2 | im^2] @ [fb ; fb]
    # -> no re/im realignment (no roll / unaligned slice) needed in the kernel.
    fb = make_lfcc_filter_bank(fn, sr, filter_num)
    fb2 = np.zeros((W, Fp), dtype=np.float32)
    fb2[:K, :F] = fb
    fb2[K:2 * K, :F] = fb

    dctp = np.zeros((Fp, Fp), dtype=np.float32)
    dctp[:F, :F] = make_dct_T(F)
    return c2, fb2, dctp


def make_delta_matrix(T):
    # delta[t] = x[min(t+1,T-1)] - x[max(t-1,0)]   (reference only)
    M = np.zeros((T, T), dtype=np.float32)
    for t in range(T):
        M[t, min(t + 1, T - 1)] += 1.0
        M[t, max(t - 1, 0)] -= 1.0
    return M


# ------------------------------- Pallas kernel -------------------------------
def _lfcc_kernel(frames_ref, c2_ref, fb2_ref, dct_ref, out_ref):
    # frames_ref: (Mt, fn)   raw frames (Hamming window folded into c2)
    # c2_ref:     (fn, W)    packed [win*cos | win*sin], W = round_up(2K, 128)
    # fb2_ref:    (W, Fp)    filter bank, rows duplicated for re/im halves
    # dct_ref:    (Fp, Fp)   zero-padded DCT.T
    # out_ref:    (Mt, Fp)   lane-dense lfcc (real data in [:, :F])
    #
    # NOTE: for v6e/v7x, production configs should keep fn (this contraction
    # dim) >= 256 to avoid running the 256-deep MXU partially empty.
    ri = jnp.dot(frames_ref[...], c2_ref[...],
                 preferred_element_type=jnp.float32)          # (Mt, W) = [re | im]
    sq = ri * ri                                              # [re^2 | im^2]
    fb_feat = jnp.log10(
        jnp.dot(sq, fb2_ref[...], preferred_element_type=jnp.float32) + EPS)
    out_ref[...] = jnp.dot(fb_feat, dct_ref[...],
                           preferred_element_type=jnp.float32)  # (Mt, Fp)


@functools.partial(
    jax.jit, static_argnames=("fl", "fs", "fn", "sr", "filter_num", "row_tile"))
def lfcc_forward(x, *, fl, fs, fn, sr, filter_num, row_tile=512):
    x = jnp.asarray(x, jnp.float32)
    B, L = x.shape
    K = fn // 2 + 1
    F = filter_num
    W = _round_up(2 * K, 128)
    Fp = _round_up(F, 128)

    # pre-emphasis (elementwise)
    x = x.at[:, 1:].set(x[:, 1:] - 0.97 * x[:, :-1])

    # center zero-pad (torch.stft center=True with explicit pad_mode='constant')
    pad = fn // 2
    xp = jnp.pad(x, ((0, 0), (pad, pad)))
    Lp = L + 2 * pad
    T = 1 + (Lp - fn) // fs

    # Gather-free overlapping framing: when fs | fn, frames are a concat of
    # fn//fs shifted block-views (pure slices, no XLA gather).
    # TODO(synk): framing could be moved fully on-chip (Element-offset BlockSpec
    # on the padded waveform + VMEM assembly) to remove the fn/fs HBM blow-up.
    if fn % fs == 0:
        r = fn // fs
        Lq = _round_up(Lp, fs)
        if Lq != Lp:
            xp = jnp.pad(xp, ((0, 0), (0, Lq - Lp)))
        blocks = xp.reshape(B, Lq // fs, fs)
        frames = jnp.concatenate(
            [blocks[:, j:j + T, :] for j in range(r)], axis=-1)  # (B, T, fn)
        frames = frames.reshape(B * T, fn)
    else:
        frame_idx = np.arange(T)[:, None] * fs + np.arange(fn)[None, :]
        frames = xp[:, frame_idx].reshape(B * T, fn)

    rows = B * T
    # Row tiling: at least 2 balanced grid steps (so the "parallel" axis can
    # shard across v7x's 2 TensorCores), tiles a multiple of 8 sublanes.
    n_steps = max(2, _cdiv(rows, row_tile))
    mt = max(8, _round_up(_cdiv(rows, n_steps), 8))
    rows_p = _round_up(rows, mt)
    if rows_p != rows:
        frames = jnp.pad(frames, ((0, rows_p - rows), (0, 0)))

    c2_np, fb2_np, dct_np = _lfcc_constants_np(fl, fn, sr, filter_num)
    c2 = jnp.asarray(c2_np)      # trace-time constants -> folded into executable
    fb2 = jnp.asarray(fb2_np)
    dctp = jnp.asarray(dct_np)

    # NOTE: casting frames/c2 to bf16 (f32 accumulation) would hit the native
    # MXU path and halve frame HBM bytes, but the bf16 DFT -> |.|^2 -> log10 ->
    # DCT chain approaches the 5e-3 validation tolerance, so inputs stay f32.
    lfcc_p = pl.pallas_call(
        _lfcc_kernel,
        out_shape=jax.ShapeDtypeStruct((rows_p, Fp), jnp.float32),
        grid=(rows_p // mt,),
        in_specs=[
            pl.BlockSpec((mt, fn), lambda i: (i, 0)),
            # c2/fb2/dct are grid-invariant (constant index_map -> DMA'd once).
            # pl.Buffered(1) on these would halve their VMEM footprint (v7x
            # headroom); left at default buffering since even at fn=1024 they
            # total only a few MiB.
            pl.BlockSpec((fn, W), lambda i: (0, 0)),
            pl.BlockSpec((W, Fp), lambda i: (0, 0)),
            pl.BlockSpec((Fp, Fp), lambda i: (0, 0)),
        ],
        out_specs=pl.BlockSpec((mt, Fp), lambda i: (i, 0)),
        compiler_params=pltpu.CompilerParams(
            dimension_semantics=("parallel",)),
    )(frames, c2, fb2, dctp)

    lfcc = lfcc_p[:rows, :F].reshape(B, T, F)

    # replicate-padded delta / delta-delta (shift-and-subtract, O(T*F) work)
    # TODO(synk): on v5e these could be fused into the kernel (Mt+2-row overlap)
    # or a second Pallas stage to cut the padded-lane intermediate store.
    def _delta(v):
        nxt = jnp.concatenate([v[:, 1:], v[:, -1:]], axis=1)
        prv = jnp.concatenate([v[:, :1], v[:, :-1]], axis=1)
        return nxt - prv

    d1 = _delta(lfcc)
    d2 = _delta(d1)
    # matches torch.cat((lfcc, delta, delta_delta), dim=2)
    return jnp.concatenate([lfcc, d1, d2], axis=2)


# ------------------------------ pure-numpy reference -------------------------
def lfcc_reference(x, *, fl, fs, fn, sr, filter_num):
    x = np.array(x, dtype=np.float64)
    B, L = x.shape
    x[:, 1:] = x[:, 1:] - 0.97 * x[:, :-1]
    pad = fn // 2
    xp = np.pad(x, ((0, 0), (pad, pad)))
    T = 1 + (L + 2 * pad - fn) // fs
    idx = np.arange(T)[:, None] * fs + np.arange(fn)[None, :]
    frames = xp[:, idx] * make_window(fl, fn)[None, None, :]
    cos_m, sin_m = make_dft_mats(fn)
    re = frames @ cos_m
    im = frames @ sin_m
    sp = re ** 2 + im ** 2
    fbf = np.log10(
        sp @ make_lfcc_filter_bank(fn, sr, filter_num).astype(np.float64) + EPS)
    lfcc = fbf @ make_dct_T(filter_num).astype(np.float64)
    D = make_delta_matrix(T).astype(np.float64)
    d1 = np.einsum('st,btf->bsf', D, lfcc)
    d2 = np.einsum('st,btf->bsf', D, d1)
    return np.concatenate([lfcc, d1, d2], axis=2)


if __name__ == "__main__":
    # small, deterministic config
    fl, fs, fn, sr, filter_num = 32, 16, 64, 16000, 20
    B, L = 2, 256

    key = jax.random.PRNGKey(0)
    x = jax.random.normal(key, (B, L), dtype=jnp.float32)

    out = lfcc_forward(x, fl=fl, fs=fs, fn=fn, sr=sr, filter_num=filter_num,
                       row_tile=512)
    out = jax.block_until_ready(out)

    ref = lfcc_reference(np.asarray(x), fl=fl, fs=fs, fn=fn, sr=sr,
                         filter_num=filter_num)
    assert out.shape == ref.shape == (B, 17, 3 * filter_num), out.shape
    np.testing.assert_allclose(np.asarray(out), ref, rtol=5e-3, atol=5e-3)
    print("KERNEL_OK")
</pallas_src>

<mosaic_0001>
module attributes {stable_mosaic.version = 11 : i64} {
  func.func @_lfcc_kernel(%arg0: i32, %arg1: memref<24x64xf32, #tpu.memory_space<vmem>>, %arg2: memref<64x128xf32, #tpu.memory_space<vmem>>, %arg3: memref<128x128xf32, #tpu.memory_space<vmem>>, %arg4: memref<128x128xf32, #tpu.memory_space<vmem>>, %arg5: memref<24x128xf32, #tpu.memory_space<vmem>>) attributes {dimension_semantics = [#tpu.dimension_semantics<parallel>], iteration_bounds = array<i64: 2>, scalar_prefetch = 0 : i64, scratch_operands = 0 : i64, tpu.core_type = #tpu.core_type<tc>, window_params = [{transform_indices = @transform_0, window_bounds = array<i64: 24, 64>}, {pipeline_mode = #tpu.pipeline_mode<synchronous>, transform_indices = @transform_1, window_bounds = array<i64: 64, 128>}, {pipeline_mode = #tpu.pipeline_mode<synchronous>, transform_indices = @transform_2, window_bounds = array<i64: 128, 128>}, {pipeline_mode = #tpu.pipeline_mode<synchronous>, transform_indices = @transform_3, window_bounds = array<i64: 128, 128>}, {transform_indices = @transform_4, window_bounds = array<i64: 24, 128>}]} {
    %c0 = arith.constant 0 : index
    %c0_0 = arith.constant 0 : index
    %0 = vector.load %arg1[%c0, %c0_0] : memref<24x64xf32, #tpu.memory_space<vmem>>, vector<24x64xf32>
    %c0_1 = arith.constant 0 : index
    %c0_2 = arith.constant 0 : index
    %1 = vector.load %arg2[%c0_1, %c0_2] : memref<64x128xf32, #tpu.memory_space<vmem>>, vector<64x128xf32>
    %cst = arith.constant dense<0.000000e+00> : vector<24x128xf32>
    %2 = tpu.matmul %0, %1, %cst {dimension_numbers = #tpu.dot_dimension_numbers<[1], [0], [0], [1], [0, 0, 1, 1], [], []>} : vector<24x64xf32>, vector<64x128xf32>, vector<24x128xf32> -> vector<24x128xf32>
    %3 = arith.mulf %2, %2 : vector<24x128xf32>
    %c0_3 = arith.constant 0 : index
    %c0_4 = arith.constant 0 : index
    %4 = vector.load %arg3[%c0_3, %c0_4] : memref<128x128xf32, #tpu.memory_space<vmem>>, vector<128x128xf32>
    %cst_5 = arith.constant dense<0.000000e+00> : vector<24x128xf32>
    %5 = tpu.matmul %3, %4, %cst_5 {dimension_numbers = #tpu.dot_dimension_numbers<[1], [0], [0], [1], [0, 0, 1, 1], [], []>} : vector<24x128xf32>, vector<128x128xf32>, vector<24x128xf32> -> vector<24x128xf32>
    %cst_6 = arith.constant 1.1920929E-7 : f32
    %6 = vector.broadcast %cst_6 : f32 to vector<24x128xf32>
    %7 = arith.addf %5, %6 : vector<24x128xf32>
    %8 = math.log %7 : vector<24x128xf32>
    %cst_7 = arith.constant 0.434294492 : f32
    %9 = vector.broadcast %cst_7 : f32 to vector<24x128xf32>
    %10 = arith.mulf %8, %9 : vector<24x128xf32>
    %c0_8 = arith.constant 0 : index
    %c0_9 = arith.constant 0 : index
    %11 = vector.load %arg4[%c0_8, %c0_9] : memref<128x128xf32, #tpu.memory_space<vmem>>, vector<128x128xf32>
    %cst_10 = arith.constant dense<0.000000e+00> : vector<24x128xf32>
    %12 = tpu.matmul %10, %11, %cst_10 {dimension_numbers = #tpu.dot_dimension_numbers<[1], [0], [0], [1], [0, 0, 1, 1], [], []>} : vector<24x128xf32>, vector<128x128xf32>, vector<24x128xf32> -> vector<24x128xf32>
    %c0_11 = arith.constant 0 : index
    %c0_12 = arith.constant 0 : index
    %13 = vector.load %arg5[%c0_11, %c0_12] : memref<24x128xf32, #tpu.memory_space<vmem>>, vector<24x128xf32>
    tpu.vector_store %arg5[%c0_11, %c0_12], %12 {strides = array<i32>} : memref<24x128xf32, #tpu.memory_space<vmem>>, vector<24x128xf32>,
    return
  }
  func.func @transform_0(%arg0: i32) -> (i32, i32) {
    %c0_i32 = arith.constant 0 : i32
    %c0_i32_0 = arith.constant 0 : i32
    return %arg0, %c0_i32 : i32, i32
  }
  func.func @transform_1(%arg0: i32) -> (i32, i32) {
    %c0_i32 = arith.constant 0 : i32
    %c0_i32_0 = arith.constant 0 : i32
    %c0_i32_1 = arith.constant 0 : i32
    return %c0_i32, %c0_i32_0 : i32, i32
  }
  func.func @transform_2(%arg0: i32) -> (i32, i32) {
    %c0_i32 = arith.constant 0 : i32
    %c0_i32_0 = arith.constant 0 : i32
    %c0_i32_1 = arith.constant 0 : i32
    return %c0_i32, %c0_i32_0 : i32, i32
  }
  func.func @transform_3(%arg0: i32) -> (i32, i32) {
    %c0_i32 = arith.constant 0 : i32
    %c0_i32_0 = arith.constant 0 : i32
    %c0_i32_1 = arith.constant 0 : i32
    return %c0_i32, %c0_i32_0 : i32, i32
  }
  func.func @transform_4(%arg0: i32) -> (i32, i32) {
    %c0_i32 = arith.constant 0 : i32
    %c0_i32_0 = arith.constant 0 : i32
    return %arg0, %c0_i32 : i32, i32
  }
}

</mosaic_0001>

<llo_original>
// kernel: lfcc_forward.1
$region0: #{lfcc_forward.1}
  #allocation0 [shape = 'u32[]', space=smem, size = 0x4, offset = 0x4, fixed_abs, tag = 'smem constant byte address 0x4 - core index']
  #allocation1 [shape = 'u32[144,128]{1,0:T(1,128)}', space=vmem, size = 0x12000, scoped, tag = 'internal scratch']
  %s0 = inlined_call_operand.vmem [shape: f32[48,64], index: 0, kind: input, shape index: {}]
  %s1 = inlined_call_operand.vmem [shape: f32[64,128], index: 1, kind: input, shape index: {}]
  %s2 = inlined_call_operand.vmem [shape: f32[128,128], index: 2, kind: input, shape index: {}]
  %s3 = inlined_call_operand.vmem [shape: f32[128,128], index: 3, kind: input, shape index: {}]
  %s4 = inlined_call_operand.vmem [shape: f32[48,128], index: 4, kind: output, shape index: {}]
  %s5 = sld [smem:[#allocation0]]
  $region49: #{lfcc_forward.1} parent=0
    _
  %s7 = ssub.s32 1, %s5
  %s8 = scalar_select 0, %s7, %s5
  loop: start=0, step=1, limit=4
  $region2: #{lfcc_forward.1} parent=0 // loop_pre_header
    _
  $region3: #{lfcc_forward.1} parent=0 // loop_header
    %s10 = sphi 0, %s14
    %p11 = scmp.ge.s32.totalorder %s10, 4
    %s20 = sphi 0, %s22
    %s23 = sphi 0, %s20
    %s24 = sphi 0, %s23
    %s40 = sphi 0, %s24
    %s44 = sphi 0, %s44
    %s46 = sphi 0, %s44
    %s47 = sphi 0, %s46
    %s61 = sphi 0, %s47
    %s65 = sphi 0, %s65
    %s67 = sphi 0, %s65
    %s68 = sphi 0, %s67
    %s82 = sphi 0, %s68
    %s86 = sphi 0, %s86
    %s88 = sphi 0, %s86
    %s89 = sphi 0, %s88
    %s103 = sphi 0, %s89
    %s109 = sphi 0, %s111
    %s112 = sphi 0, %s109
    %s113 = sphi 0, %s112
    %s129 = sphi 0, %s113
  $region4: #{lfcc_forward.1} parent=0 // loop_header_branch
    %13 = sbr.rel (%p11) target = $region8
  $region5: #{lfcc_forward.1} parent=0 // loop_body
    %s15 = ssub.s32 %s10, 1
    %s16 = ssub.s32 %s10, 2
    %s17 = sadd.s32 %s10, 1
    %s18 = ssub.s32 %s10, %s17
    %p19 = scmp.eq.s32.totalorder %s18, 0
    %s21 = sadd.s32 %s20, 1
    %s22 = scalar_select %p19, %s20, %s21
    %p25 = pneg %p19
    %p26 = scmp.eq.s32.totalorder %s10, 1
    %p27 = por %p25, %p26
    %p28 = scmp.ne.s32.totalorder %s20, %s23
    %p29 = scmp.eq.s32.totalorder %s10, 0
    %p30 = por %p28, %p29
    %p31 = scmp.ne.s32.totalorder %s20, %s23
    %p32 = scmp.eq.s32.totalorder %s15, 1
    %p33 = por %p31, %p32
    %p34 = scmp.ne.s32.totalorder %s23, %s24
    %p35 = scmp.eq.s32.totalorder %s15, 0
    %p36 = por %p34, %p35
    %p37 = scmp.ne.s32.totalorder %s23, %s24
    %p38 = scmp.eq.s32.totalorder %s16, 1
    %p39 = por %p37, %p38
    %p41 = scmp.ne.s32.totalorder %s24, %s40
    %p42 = scmp.eq.s32.totalorder %s16, 0
    %p43 = por %p41, %p42
    %s45 = sadd.s32 %s44, 1
    %p48 = scmp.eq.s32.totalorder %s10, 1
    %p49 = scmp.ne.s32.totalorder %s44, %s46
    %p50 = scmp.eq.s32.totalorder %s10, 0
    %p51 = por %p49, %p50
    %p52 = scmp.ne.s32.totalorder %s44, %s46
    %p53 = scmp.eq.s32.totalorder %s15, 1
    %p54 = por %p52, %p53
    %p55 = scmp.ne.s32.totalorder %s46, %s47
    %p56 = scmp.eq.s32.totalorder %s15, 0
    %p57 = por %p55, %p56
    %p58 = scmp.ne.s32.totalorder %s46, %s47
    %p59 = scmp.eq.s32.totalorder %s16, 1
    %p60 = por %p58, %p59
    %p62 = scmp.ne.s32.totalorder %s47, %s61
    %p63 = scmp.eq.s32.totalorder %s16, 0
    %p64 = por %p62, %p63
    %s66 = sadd.s32 %s65, 1
    %p69 = scmp.eq.s32.totalorder %s10, 1
    %p70 = scmp.ne.s32.totalorder %s65, %s67
    %p71 = scmp.eq.s32.totalorder %s10, 0
    %p72 = por %p70, %p71
    %p73 = scmp.ne.s32.totalorder %s65, %s67
    %p74 = scmp.eq.s32.totalorder %s15, 1
    %p75 = por %p73, %p74
    %p76 = scmp.ne.s32.totalorder %s67, %s68
    %p77 = scmp.eq.s32.totalorder %s15, 0
    %p78 = por %p76, %p77
    %p79 = scmp.ne.s32.totalorder %s67, %s68
    %p80 = scmp.eq.s32.totalorder %s16, 1
    %p81 = por %p79, %p80
    %p83 = scmp.ne.s32.totalorder %s68, %s82
    %p84 = scmp.eq.s32.totalorder %s16, 0
    %p85 = por %p83, %p84
    %s87 = sadd.s32 %s86, 1
    %p90 = scmp.eq.s32.totalorder %s10, 1
    %p91 = scmp.ne.s32.totalorder %s86, %s88
    %p92 = scmp.eq.s32.totalorder %s10, 0
    %p93 = por %p91, %p92
    %p94 = scmp.ne.s32.totalorder %s86, %s88
    %p95 = scmp.eq.s32.totalorder %s15, 1
    %p96 = por %p94, %p95
    %p97 = scmp.ne.s32.totalorder %s88, %s89
    %p98 = scmp.eq.s32.totalorder %s15, 0
    %p99 = por %p97, %p98
    %p100 = scmp.ne.s32.totalorder %s88, %s89
    %p101 = scmp.eq.s32.totalorder %s16, 1
    %p102 = por %p100, %p101
    %p104 = scmp.ne.s32.totalorder %s89, %s103
    %p105 = scmp.eq.s32.totalorder %s16, 0
    %p106 = por %p104, %p105
    %s107 = ssub.s32 %s10, %s17
    %p108 = scmp.eq.s32.totalorder %s107, 0
    %s110 = sadd.s32 %s109, 1
    %s111 = scalar_select %p108, %s109, %s110
    %p114 = pneg %p108
    %p115 = scmp.eq.s32.totalorder %s10, 1
    %p116 = por %p114, %p115
    %p117 = scmp.ne.s32.totalorder %s109, %s112
    %p118 = scmp.eq.s32.totalorder %s10, 0
    %p119 = por %p117, %p118
    %p120 = scmp.ne.s32.totalorder %s109, %s112
    %p121 = scmp.eq.s32.totalorder %s15, 1
    %p122 = por %p120, %p121
    %p123 = scmp.ne.s32.totalorder %s112, %s113
    %p124 = scmp.eq.s32.totalorder %s15, 0
    %p125 = por %p123, %p124
    %p126 = scmp.ne.s32.totalorder %s112, %s113
    %p127 = scmp.eq.s32.totalorder %s16, 1
    %p128 = por %p126, %p127
    %p130 = scmp.ne.s32.totalorder %s113, %s129
    %p131 = scmp.eq.s32.totalorder %s16, 0
    %p132 = por %p130, %p131
    %p133 = scmp.le.s32.totalorder 1, %s10
    %p134 = scmp.lt.s32.totalorder %s10, 3
    %p135 = pnand %p133, %p134
    %p136 = pneg %p135
    // Predicated region
    $region9: #{lfcc_forward.1} parent=5 // pred_check
      _
    $region10: #{lfcc_forward.1} parent=5 // pred_check_branch
      %138 = sbr.rel (%p135) target = $region12
    $region11: #{lfcc_forward.1} parent=5 // pred_region
      %s139 = ssub.s32 %s10, 1
      // Predicated region
      $region13: #{lfcc_forward.1} parent=11 // pred_check
        %p140 = pneg %p57
      $region14: #{lfcc_forward.1} parent=11 // pred_check_branch
        %142 = sbr.rel (%p140) target = $region16
      $region15: #{lfcc_forward.1} parent=11 // pred_region
        _
      $region16: #{lfcc_forward.1} parent=11 // pred_fallthru
        _
      // Predicated region
      $region17: #{lfcc_forward.1} parent=11 // pred_check
        %p143 = pneg %p78
      $region18: #{lfcc_forward.1} parent=11 // pred_check_branch
        %145 = sbr.rel (%p143) target = $region20
      $region19: #{lfcc_forward.1} parent=11 // pred_region
        _
      $region20: #{lfcc_forward.1} parent=11 // pred_fallthru
        _
      // Predicated region
      $region21: #{lfcc_forward.1} parent=11 // pred_check
        %p146 = pneg %p99
      $region22: #{lfcc_forward.1} parent=11 // pred_check_branch
        %148 = sbr.rel (%p146) target = $region24
      $region23: #{lfcc_forward.1} parent=11 // pred_region
        _
      $region24: #{lfcc_forward.1} parent=11 // pred_fallthru
        _
    $region12: #{lfcc_forward.1} parent=5 // pred_fallthru
      _
    %p149 = scmp.lt.s32.totalorder %s10, 2
    // Predicated region
    $region25: #{lfcc_forward.1} parent=5 // pred_check
      %p150 = pneg %p149
    $region26: #{lfcc_forward.1} parent=5 // pred_check_branch
      %152 = sbr.rel (%p150) target = $region28
    $region27: #{lfcc_forward.1} parent=5 // pred_region
      // Predicated region
      $region29: #{lfcc_forward.1} parent=27 // pred_check
        %p153 = pneg %p30
      $region30: #{lfcc_forward.1} parent=27 // pred_check_branch
        %155 = sbr.rel (%p153) target = $region32
      $region31: #{lfcc_forward.1} parent=27 // pred_region
        %s156 = smul.u32 3, %s10
        %p157 = scmp.lt.s32.totalorder %s156, 5
        %s158 = scalar_select %p157, %s156, 5
        %s159 = smul.addr %s158, 8
        %s160 = scalar_lea.vmem %s0, %s159
        %s161 = smul.u32 3, %s10
      $region32: #{lfcc_forward.1} parent=27 // pred_fallthru
        _
    $region28: #{lfcc_forward.1} parent=5 // pred_fallthru
      _
    %p162 = scmp.le.s32.totalorder 1, %s10
    %p163 = scmp.lt.s32.totalorder %s10, 3
    %p164 = pnand %p162, %p163
    %p165 = pneg %p164
    // Predicated region
    $region33: #{lfcc_forward.1} parent=5 // pred_check
      _
    $region34: #{lfcc_forward.1} parent=5 // pred_check_branch
      %167 = sbr.rel (%p164) target = $region36
    $region35: #{lfcc_forward.1} parent=5 // pred_region
      %s168 = ssub.s32 %s10, 1
      %s169 = smul.u32 3, %s15
      %p170 = scmp.lt.s32.totalorder %s169, 5
      %s171 = scalar_select %p170, %s169, 5
      %s172 = smul.addr %s171, 8
      %s173 = scalar_lea.vmem %s0, %s172
      %p174 = pneg %p36
      %p175 = pneg %p33
      %p176 = pneg %p57
      %p177 = pneg %p54
      %p178 = pneg %p78
      %p179 = pneg %p75
      %p180 = pneg %p99
      %p181 = pneg %p96
      %p182 = pneg %p125
      %p183 = pneg %p122
      %s184 = smul.u32 3, %s15
      %p185 = scmp.lt.s32.totalorder %s184, 5
      %s186 = scalar_select %p185, %s184, 5
      %s187 = smul.addr %s186, 8
      %s188 = scalar_lea.vmem %s4, %s187
      %s189 = smul.u32 3, %s15
      %p190 = scmp.lt.s32.totalorder %s189, 5
      %s191 = scalar_select %p190, %s189, 5
      %s192 = smul.addr %s191, 8
      %s193 = scalar_lea.vmem %s0, %s192
      %s194 = smul.u32 3, %s15
      %s195 = smul.u32 3, %s15
      %p196 = scmp.lt.s32.totalorder %s195, 5
      %s197 = scalar_select %p196, %s195, 5
      %s198 = smul.addr %s197, 8
      %s199 = scalar_lea.vmem %s4, %s198
      %s200 = smul.u32 3, %s15
      %v201 = vld [vmem:[%s193] sm:$0xff]
      %v202 = vld [vmem:[%s193 + $0x8] sm:$0xff]
      %v203 = vld [vmem:[%s193 + $0x10] sm:$0xff]
      %v204 = vld [vmem:[%s1] sm:$0xff]
      %v205 = vld [vmem:[%s1 + $0x8] sm:$0xff]
      %v206 = vld [vmem:[%s1 + $0x10] sm:$0xff]
      %v207 = vld [vmem:[%s1 + $0x18] sm:$0xff]
      %v208 = vld [vmem:[%s1 + $0x20] sm:$0xff]
      %v209 = vld [vmem:[%s1 + $0x28] sm:$0xff]
      %v210 = vld [vmem:[%s1 + $0x30] sm:$0xff]
      %v211 = vld [vmem:[%s1 + $0x38] sm:$0xff]
      %vm212 = vcmask 523264
      %v214 = vsel %vm212, %v201, 0
      %v217 = vsel %vm212, %v202, 0
      %v220 = vsel %vm212, %v203, 0
      %222 = vmatprep.subr.mxu0 0.0
      %223 = vmatpush1.msra.mxu0 %v204
      %224 = vmatprep.subr.mxu0 0.0
      %225 = vmatpush1.msra.mxu0 %v205
      %226 = vmatprep.subr.mxu0 0.0
      %227 = vmatpush1.msra.mxu0 %v206
      %228 = vmatprep.subr.mxu0 0.0
      %229 = vmatpush1.msra.mxu0 %v207
      %230 = vmatprep.subr.mxu0 0.0
      %231 = vmatpush1.msra.mxu0 %v208
      %232 = vmatprep.subr.mxu0 0.0
      %233 = vmatpush1.msra.mxu0 %v209
      %234 = vmatprep.subr.mxu0 0.0
      %235 = vmatpush1.msra.mxu0 %v210
      %236 = vmatprep.subr.mxu0 0.0
      %237 = vmatpush1.msra.mxu0 %v211
      %238 = vmatprep.subr.mxu0 0.0
      %239 = vmatpush1.msra.mxu0 0.0
      %240 = vmatprep.subr.mxu0 0.0
      %241 = vmatpush1.msra.mxu0 0.0
      %242 = vmatprep.subr.mxu0 0.0
      %243 = vmatpush1.msra.mxu0 0.0
      %244 = vmatprep.subr.mxu0 0.0
      %245 = vmatpush1.msra.mxu0 0.0
      %246 = vmatprep.subr.mxu0 0.0
      %247 = vmatpush1.msra.mxu0 0.0
      %248 = vmatprep.subr.mxu0 0.0
      %249 = vmatpush1.msra.mxu0 0.0
      %250 = vmatprep.subr.mxu0 0.0
      %251 = vmatpush1.msra.mxu0 0.0
      %252 = vmatprep.subr.mxu0 0.0
      %253 = vmatpush1.msra.mxu0 0.0
      %254 = vmatprep.subr.mxu0 0.0
      %255 = vmatpush1.msra.mxu0 0.0
      %256 = vmatprep.subr.mxu0 0.0
      %257 = vmatpush1.msra.mxu0 0.0
      %258 = vmatprep.subr.mxu0 0.0
      %259 = vmatpush1.msra.mxu0 0.0
      %260 = vmatprep.subr.mxu0 0.0
      %261 = vmatpush1.msra.mxu0 0.0
      %262 = vmatprep.subr.mxu0 0.0
      %263 = vmatpush1.msra.mxu0 0.0
      %264 = vmatprep.subr.mxu0 0.0
      %265 = vmatpush1.msra.mxu0 0.0
      %266 = vmatprep.subr.mxu0 0.0
      %267 = vmatpush1.msra.mxu0 0.0
      %268 = vmatprep.subr.mxu0 0.0
      %269 = vmatpush1.msra.mxu0 0.0
      %270 = vmatprep.subr.mxu0 0.0
      %271 = vmatpush1.msra.mxu0 0.0
      %272 = vmatprep.subr.mxu0 0.0
      %273 = vmatpush1.msra.mxu0 0.0
      %274 = vmatprep.subr.mxu0 0.0
      %275 = vmatpush1.msra.mxu0 0.0
      %276 = vmatprep.subr.mxu0 0.0
      %277 = vmatpush1.msra.mxu0 0.0
      %278 = vmatprep.subr.mxu0 0.0
      %279 = vmatpush1.msra.mxu0 0.0
      %280 = vmatprep.subr.mxu0 0.0
      %281 = vmatpush1.msra.mxu0 0.0
      %282 = vmatprep.subr.mxu0 0.0
      %283 = vmatpush1.msra.mxu0 0.0
      %284 = vmatprep.subr.mxu0 0.0
      %285 = vmatpush1.msra.mxu0 0.0
      %286 = vmatprep.mubr.f32.mxu0 0.0
      %287 = vmatmul.mubr.f32.gmra.mrb[0].mxu0 %v214
      %v288 = vpop.f32.mrb[0].mxu0
      %v289 = vadd.f32 0.0, %v288
      %v290 = vpop.f32.mrb[0].mxu0
      %291 = vmatprep.mubr.f32.mxu0 0.0
      %292 = vmatmul.mubr.f32.gmra.mrb[0].mxu0 %v217
      %v293 = vpop.f32.mrb[0].mxu0
      %v294 = vadd.f32 0.0, %v293
      %v295 = vpop.f32.mrb[0].mxu0
      %296 = vmatprep.mubr.f32.mxu0 0.0
      %297 = vmatmul.mubr.f32.gmra.mrb[0].mxu0 %v220
      %v298 = vpop.f32.mrb[0].mxu0
      %v299 = vadd.f32 0.0, %v298
      %v300 = vpop.f32.mrb[0].mxu0
      %301 = vdwg.mxu0
      %v302 = vmul.f32 %v289, %v289
      %v303 = vmul.f32 %v294, %v294
      %v304 = vmul.f32 %v299, %v299
      %v305 = vld [vmem:[%s2] sm:$0xff]
      %v306 = vld [vmem:[%s2 + $0x8] sm:$0xff]
      %v307 = vld [vmem:[%s2 + $0x10] sm:$0xff]
      %v308 = vld [vmem:[%s2 + $0x18] sm:$0xff]
      %v309 = vld [vmem:[%s2 + $0x20] sm:$0xff]
      %v310 = vld [vmem:[%s2 + $0x28] sm:$0xff]
      %v311 = vld [vmem:[%s2 + $0x30] sm:$0xff]
      %v312 = vld [vmem:[%s2 + $0x38] sm:$0xff]
      %v313 = vld [vmem:[%s2 + $0x40] sm:$0xff]
      %v314 = vld [vmem:[%s2 + $0x48] sm:$0xff]
      %v315 = vld [vmem:[%s2 + $0x50] sm:$0xff]
      %v316 = vld [vmem:[%s2 + $0x58] sm:$0xff]
      %v317 = vld [vmem:[%s2 + $0x60] sm:$0xff]
      %v318 = vld [vmem:[%s2 + $0x68] sm:$0xff]
      %v319 = vld [vmem:[%s2 + $0x70] sm:$0xff]
      %v320 = vld [vmem:[%s2 + $0x78] sm:$0xff]
      %321 = vmatprep.subr.mxu0 0.0
      %322 = vmatpush1.msra.mxu0 %v305
      %323 = vmatprep.subr.mxu0 0.0
      %324 = vmatpush1.msra.mxu0 %v306
      %325 = vmatprep.subr.mxu0 0.0
      %326 = vmatpush1.msra.mxu0 %v307
      %327 = vmatprep.subr.mxu0 0.0
      %328 = vmatpush1.msra.mxu0 %v308
      %329 = vmatprep.subr.mxu0 0.0
      %330 = vmatpush1.msra.mxu0 %v309
      %331 = vmatprep.subr.mxu0 0.0
      %332 = vmatpush1.msra.mxu0 %v310
      %333 = vmatprep.subr.mxu0 0.0
      %334 = vmatpush1.msra.mxu0 %v311
      %335 = vmatprep.subr.mxu0 0.0
      %336 = vmatpush1.msra.mxu0 %v312
      %337 = vmatprep.subr.mxu0 0.0
      %338 = vmatpush1.msra.mxu0 %v313
      %339 = vmatprep.subr.mxu0 0.0
      %340 = vmatpush1.msra.mxu0 %v314
      %341 = vmatprep.subr.mxu0 0.0
      %342 = vmatpush1.msra.mxu0 %v315
      %343 = vmatprep.subr.mxu0 0.0
      %344 = vmatpush1.msra.mxu0 %v316
      %345 = vmatprep.subr.mxu0 0.0
      %346 = vmatpush1.msra.mxu0 %v317
      %347 = vmatprep.subr.mxu0 0.0
      %348 = vmatpush1.msra.mxu0 %v318
      %349 = vmatprep.subr.mxu0 0.0
      %350 = vmatpush1.msra.mxu0 %v319
      %351 = vmatprep.subr.mxu0 0.0
      %352 = vmatpush1.msra.mxu0 %v320
      %353 = vmatprep.subr.mxu0 0.0
      %354 = vmatpush1.msra.mxu0 0.0
      %355 = vmatprep.subr.mxu0 0.0
      %356 = vmatpush1.msra.mxu0 0.0
      %357 = vmatprep.subr.mxu0 0.0
      %358 = vmatpush1.msra.mxu0 0.0
      %359 = vmatprep.subr.mxu0 0.0
      %360 = vmatpush1.msra.mxu0 0.0
      %361 = vmatprep.subr.mxu0 0.0
      %362 = vmatpush1.msra.mxu0 0.0
      %363 = vmatprep.subr.mxu0 0.0
      %364 = vmatpush1.msra.mxu0 0.0
      %365 = vmatprep.subr.mxu0 0.0
      %366 = vmatpush1.msra.mxu0 0.0
      %367 = vmatprep.subr.mxu0 0.0
      %368 = vmatpush1.msra.mxu0 0.0
      %369 = vmatprep.subr.mxu0 0.0
      %370 = vmatpush1.msra.mxu0 0.0
      %371 = vmatprep.subr.mxu0 0.0
      %372 = vmatpush1.msra.mxu0 0.0
      %373 = vmatprep.subr.mxu0 0.0
      %374 = vmatpush1.msra.mxu0 0.0
      %375 = vmatprep.subr.mxu0 0.0
      %376 = vmatpush1.msra.mxu0 0.0
      %377 = vmatprep.subr.mxu0 0.0
      %378 = vmatpush1.msra.mxu0 0.0
      %379 = vmatprep.subr.mxu0 0.0
      %380 = vmatpush1.msra.mxu0 0.0
      %381 = vmatprep.subr.mxu0 0.0
      %382 = vmatpush1.msra.mxu0 0.0
      %383 = vmatprep.subr.mxu0 0.0
      %384 = vmatpush1.msra.mxu0 0.0
      %385 = vmatprep.mubr.f32.mxu0 0.0
      %386 = vmatmul.mubr.f32.gmra.mrb[0].mxu0 %v302
      %v387 = vpop.f32.mrb[0].mxu0
      %v388 = vadd.f32 1.1920929e-07, %v387
      %v389 = vpop.f32.mrb[0].mxu0
      %390 = vmatprep.mubr.f32.mxu0 0.0
      %391 = vmatmul.mubr.f32.gmra.mrb[0].mxu0 %v303
      %v392 = vpop.f32.mrb[0].mxu0
      %v393 = vadd.f32 1.1920929e-07, %v392
      %v394 = vpop.f32.mrb[0].mxu0
      %395 = vmatprep.mubr.f32.mxu0 0.0
      %396 = vmatmul.mubr.f32.gmra.mrb[0].mxu0 %v304
      %v397 = vpop.f32.mrb[0].mxu0
      %v398 = vadd.f32 1.1920929e-07, %v397
      %v399 = vpop.f32.mrb[0].mxu0
      %400 = vdwg.mxu0
      %v401 = vlog2.pop %v388
      %v402 = vmul.f32 %v401, 0.6931472
      %v403 = vlog2.pop %v393
      %v404 = vmul.f32 %v403, 0.6931472
      %v405 = vlog2.pop %v398
      %v406 = vmul.f32 %v405, 0.6931472
      %v407 = vmul.f32 %v402, 0.4342945
      %v408 = vmul.f32 %v404, 0.4342945
      %v409 = vmul.f32 %v406, 0.4342945
      %v410 = vld [vmem:[%s3] sm:$0xff]
      %v411 = vld [vmem:[%s3 + $0x8] sm:$0xff]
      %v412 = vld [vmem:[%s3 + $0x10] sm:$0xff]
      %v413 = vld [vmem:[%s3 + $0x18] sm:$0xff]
      %v414 = vld [vmem:[%s3 + $0x20] sm:$0xff]
      %v415 = vld [vmem:[%s3 + $0x28] sm:$0xff]
      %v416 = vld [vmem:[%s3 + $0x30] sm:$0xff]
      %v417 = vld [vmem:[%s3 + $0x38] sm:$0xff]
      %v418 = vld [vmem:[%s3 + $0x40] sm:$0xff]
      %v419 = vld [vmem:[%s3 + $0x48] sm:$0xff]
      %v420 = vld [vmem:[%s3 + $0x50] sm:$0xff]
      %v421 = vld [vmem:[%s3 + $0x58] sm:$0xff]
      %v422 = vld [vmem:[%s3 + $0x60] sm:$0xff]
      %v423 = vld [vmem:[%s3 + $0x68] sm:$0xff]
      %v424 = vld [vmem:[%s3 + $0x70] sm:$0xff]
      %v425 = vld [vmem:[%s3 + $0x78] sm:$0xff]
      %426 = vmatprep.subr.mxu0 0.0
      %427 = vmatpush1.msra.mxu0 %v410
      %428 = vmatprep.subr.mxu0 0.0
      %429 = vmatpush1.msra.mxu0 %v411
      %430 = vmatprep.subr.mxu0 0.0
      %431 = vmatpush1.msra.mxu0 %v412
      %432 = vmatprep.subr.mxu0 0.0
      %433 = vmatpush1.msra.mxu0 %v413
      %434 = vmatprep.subr.mxu0 0.0
      %435 = vmatpush1.msra.mxu0 %v414
      %436 = vmatprep.subr.mxu0 0.0
      %437 = vmatpush1.msra.mxu0 %v415
      %438 = vmatprep.subr.mxu0 0.0
      %439 = vmatpush1.msra.mxu0 %v416
      %440 = vmatprep.subr.mxu0 0.0
      %441 = vmatpush1.msra.mxu0 %v417
      %442 = vmatprep.subr.mxu0 0.0
      %443 = vmatpush1.msra.mxu0 %v418
      %444 = vmatprep.subr.mxu0 0.0
      %445 = vmatpush1.msra.mxu0 %v419
      %446 = vmatprep.subr.mxu0 0.0
      %447 = vmatpush1.msra.mxu0 %v420
      %448 = vmatprep.subr.mxu0 0.0
      %449 = vmatpush1.msra.mxu0 %v421
      %450 = vmatprep.subr.mxu0 0.0
      %451 = vmatpush1.msra.mxu0 %v422
      %452 = vmatprep.subr.mxu0 0.0
      %453 = vmatpush1.msra.mxu0 %v423
      %454 = vmatprep.subr.mxu0 0.0
      %455 = vmatpush1.msra.mxu0 %v424
      %456 = vmatprep.subr.mxu0 0.0
      %457 = vmatpush1.msra.mxu0 %v425
      %458 = vmatprep.subr.mxu0 0.0
      %459 = vmatpush1.msra.mxu0 0.0
      %460 = vmatprep.subr.mxu0 0.0
      %461 = vmatpush1.msra.mxu0 0.0
      %462 = vmatprep.subr.mxu0 0.0
      %463 = vmatpush1.msra.mxu0 0.0
      %464 = vmatprep.subr.mxu0 0.0
      %465 = vmatpush1.msra.mxu0 0.0
      %466 = vmatprep.subr.mxu0 0.0
      %467 = vmatpush1.msra.mxu0 0.0
      %468 = vmatprep.subr.mxu0 0.0
      %469 = vmatpush1.msra.mxu0 0.0
      %470 = vmatprep.subr.mxu0 0.0
      %471 = vmatpush1.msra.mxu0 0.0
      %472 = vmatprep.subr.mxu0 0.0
      %473 = vmatpush1.msra.mxu0 0.0
      %474 = vmatprep.subr.mxu0 0.0
      %475 = vmatpush1.msra.mxu0 0.0
      %476 = vmatprep.subr.mxu0 0.0
      %477 = vmatpush1.msra.mxu0 0.0
      %478 = vmatprep.subr.mxu0 0.0
      %479 = vmatpush1.msra.mxu0 0.0
      %480 = vmatprep.subr.mxu0 0.0
      %481 = vmatpush1.msra.mxu0 0.0
      %482 = vmatprep.subr.mxu0 0.0
      %483 = vmatpush1.msra.mxu0 0.0
      %484 = vmatprep.subr.mxu0 0.0
      %485 = vmatpush1.msra.mxu0 0.0
      %486 = vmatprep.subr.mxu0 0.0
      %487 = vmatpush1.msra.mxu0 0.0
      %488 = vmatprep.subr.mxu0 0.0
      %489 = vmatpush1.msra.mxu0 0.0
      %490 = vmatprep.mubr.f32.mxu0 0.0
      %491 = vmatmul.mubr.f32.gmra.mrb[0].mxu0 %v407
      %v492 = vpop.f32.mrb[0].mxu0
      %v493 = vadd.f32 0.0, %v492
      %v494 = vpop.f32.mrb[0].mxu0
      %495 = vmatprep.mubr.f32.mxu0 0.0
      %496 = vmatmul.mubr.f32.gmra.mrb[0].mxu0 %v408
      %v497 = vpop.f32.mrb[0].mxu0
      %v498 = vadd.f32 0.0, %v497
      %v499 = vpop.f32.mrb[0].mxu0
      %500 = vmatprep.mubr.f32.mxu0 0.0
      %501 = vmatmul.mubr.f32.gmra.mrb[0].mxu0 %v409
      %v502 = vpop.f32.mrb[0].mxu0
      %v503 = vadd.f32 0.0, %v502
      %v504 = vpop.f32.mrb[0].mxu0
      %505 = vdwg.mxu0
      %506 = vst [vmem:[%s199] sm:$0xff] %v493
      %507 = vst [vmem:[%s199 + $0x8] sm:$0xff] %v498
      %508 = vst [vmem:[%s199 + $0x10] sm:$0xff] %v503
      %s509 = smul.u32 3, %s15
      %p510 = scmp.lt.s32.totalorder %s509, 5
      %s511 = scalar_select %p510, %s509, 5
      %s512 = smul.addr %s511, 8
      %s513 = scalar_lea.vmem %s4, %s512
      // Predicated region
      $region37: #{lfcc_forward.1} parent=35 // pred_check
        %p514 = pneg %p122
      $region38: #{lfcc_forward.1} parent=35 // pred_check_branch
        %516 = sbr.rel (%p514) target = $region40
      $region39: #{lfcc_forward.1} parent=35 // pred_region
        %s517 = smul.u32 3, %s15
      $region40: #{lfcc_forward.1} parent=35 // pred_fallthru
        _
    $region36: #{lfcc_forward.1} parent=5 // pred_fallthru
      _
    %p518 = scmp.le.s32.totalorder 2, %s10
    // Predicated region
    $region41: #{lfcc_forward.1} parent=5 // pred_check
      %p519 = pneg %p518
    $region42: #{lfcc_forward.1} parent=5 // pred_check_branch
      %521 = sbr.rel (%p519) target = $region44
    $region43: #{lfcc_forward.1} parent=5 // pred_region
      %s522 = ssub.s32 %s10, 2
      // Predicated region
      $region45: #{lfcc_forward.1} parent=43 // pred_check
        %p523 = pneg %p128
      $region46: #{lfcc_forward.1} parent=43 // pred_check_branch
        %525 = sbr.rel (%p523) target = $region48
      $region47: #{lfcc_forward.1} parent=43 // pred_region
        %s526 = smul.u32 3, %s16
        %p527 = scmp.lt.s32.totalorder %s526, 5
        %s528 = scalar_select %p527, %s526, 5
        %s529 = smul.addr %s528, 8
        %s530 = scalar_lea.vmem %s4, %s529
      $region48: #{lfcc_forward.1} parent=43 // pred_fallthru
        _
    $region44: #{lfcc_forward.1} parent=5 // pred_fallthru
      _
  $region6: #{lfcc_forward.1} parent=0 // loop_footer
    %s14 = sadd.s32 1, %s10
  $region7: #{lfcc_forward.1} parent=0 // loop_footer_branch
    %9 = sbr.rel target = $region3
  $region8: #{lfcc_forward.1} parent=0 // loop_exit
    _

</llo_original>
